<compile_context>
chip_gen: v5e
topology: v5e:2x2
jax: 0.10.0
libtpu: 0.0.40
codegen_flags: <defaults>
</compile_context>

<pallas_src>
import jax
import jax.numpy as jnp
from jax.experimental import pallas as pl
from jax.experimental.pallas import tpu as pltpu


def _round_up(n, m):
    return ((n + m - 1) // m) * m


def mlp_kernel(x_ref, w1_ref, b1_ref, w2_ref, b2_ref, w3_ref, b3_ref, o_ref):
    # All activations are feature-major: (features, batch_tile).
    x = x_ref[...]                                                      # (9,  T)
    h1 = jnp.dot(w1_ref[...], x, preferred_element_type=jnp.float32)   # (32, T)
    h1 = jnp.maximum(h1 + b1_ref[...], 0.0)
    h2 = jnp.dot(w2_ref[...], h1, preferred_element_type=jnp.float32)  # (32, T)
    h2 = jnp.maximum(h2 + b2_ref[...], 0.0)
    y = jnp.dot(w3_ref[...], h2, preferred_element_type=jnp.float32)   # (3,  T)
    o_ref[...] = (y + b3_ref[...]).astype(o_ref.dtype)


def mlp_forward(x, params, *, batch_tile=2048):
    """x: [B, 9] float32. Returns [B, 3]."""
    w1, b1, w2, b2, w3, b3 = params
    B, D_in = x.shape
    D_out = w3.shape[0]

    # Batch lives on the 128-lane axis, so the tile must be a multiple of 128.
    tile = max(128, min(_round_up(batch_tile, 128), _round_up(B, 128)))
    Bp = _round_up(B, tile)
    grid = Bp // tile

    # Layout plumbing stays in the wrapper: pad the batch, then transpose so
    # the kernel sees a lane-dense [features, batch] slab.
    x_pad = x if Bp == B else jnp.pad(x, ((0, Bp - B), (0, 0)))
    x_t = x_pad.T  # (D_in, Bp)

    full = lambda arr: pl.BlockSpec(arr.shape, lambda i: (0, 0))

    y_t = pl.pallas_call(
        mlp_kernel,
        out_shape=jax.ShapeDtypeStruct((D_out, Bp), x.dtype),
        grid_spec=pl.GridSpec(
            grid=(grid,),
            in_specs=[
                pl.BlockSpec((D_in, tile), lambda i: (0, i)),  # x tile, batch on lanes
                full(w1), full(b1),
                full(w2), full(b2),
                full(w3), full(b3),
            ],
            out_specs=pl.BlockSpec((D_out, tile), lambda i: (0, i)),
        ),
        compiler_params=pltpu.CompilerParams(
            dimension_semantics=("parallel",),
        ),
    )(x_t, w1, b1, w2, b2, w3, b3)

    return y_t.T[:B]


def init_params(key):
    """Deterministic init matching nn.Linear: W is [out, in], b is [out, 1]."""
    def linear(k, fan_in, fan_out):
        kw, kb = jax.random.split(k)
        bound = 1.0 / jnp.sqrt(fan_in)
        w = jax.random.uniform(kw, (fan_out, fan_in), jnp.float32, -bound, bound)
        b = jax.random.uniform(kb, (fan_out, 1), jnp.float32, -bound, bound)
        return w, b

    k1, k2, k3 = jax.random.split(key, 3)
    w1, b1 = linear(k1, 9, 32)
    w2, b2 = linear(k2, 32, 32)
    w3, b3 = linear(k3, 32, 3)
    return (w1, b1, w2, b2, w3, b3)


def reference_forward(x, params):
    """Pure-JAX reference in the usual [B, features] layout."""
    w1, b1, w2, b2, w3, b3 = params
    h1 = jnp.maximum(x @ w1.T + b1.T, 0.0)
    h2 = jnp.maximum(h1 @ w2.T + b2.T, 0.0)
    return h2 @ w3.T + b3.T


if __name__ == "__main__":
    key = jax.random.PRNGKey(0)
    k_params, k_x = jax.random.split(key)

    params = init_params(k_params)

    # Small demo shape consistent with the module (batch=16, 9 input features).
    x = jax.random.normal(k_x, (16, 9), dtype=jnp.float32)

    y = mlp_forward(x, params)
    y = jax.block_until_ready(y)

    y_ref = reference_forward(x, params)
    assert y.shape == (16, 3)
    assert jnp.allclose(y, y_ref, atol=1e-5, rtol=1e-5), "mismatch vs reference"

    # Also exercise a non-divisible, multi-tile batch to check the padded path.
    x_big = jax.random.normal(k_x, (300, 9), dtype=jnp.float32)
    y_big = jax.block_until_ready(mlp_forward(x_big, params, batch_tile=128))
    assert y_big.shape == (300, 3)
    assert jnp.allclose(y_big, reference_forward(x_big, params), atol=1e-5, rtol=1e-5)

    print("KERNEL_OK")
</pallas_src>

<mosaic_0001>
module attributes {stable_mosaic.version = 11 : i64} {
  func.func @mlp_kernel(%arg0: i32, %arg1: memref<9x128xf32, #tpu.memory_space<vmem>>, %arg2: memref<32x9xf32, #tpu.memory_space<vmem>>, %arg3: memref<32x1xf32, #tpu.memory_space<vmem>>, %arg4: memref<32x32xf32, #tpu.memory_space<vmem>>, %arg5: memref<32x1xf32, #tpu.memory_space<vmem>>, %arg6: memref<3x32xf32, #tpu.memory_space<vmem>>, %arg7: memref<3x1xf32, #tpu.memory_space<vmem>>, %arg8: memref<3x128xf32, #tpu.memory_space<vmem>>) attributes {dimension_semantics = [#tpu.dimension_semantics<parallel>], iteration_bounds = array<i64: 1>, scalar_prefetch = 0 : i64, scratch_operands = 0 : i64, tpu.core_type = #tpu.core_type<tc>, window_params = [{transform_indices = @transform_0, window_bounds = array<i64: 9, 128>}, {pipeline_mode = #tpu.pipeline_mode<synchronous>, transform_indices = @transform_1, window_bounds = array<i64: 32, 9>}, {pipeline_mode = #tpu.pipeline_mode<synchronous>, transform_indices = @transform_2, window_bounds = array<i64: 32, 1>}, {pipeline_mode = #tpu.pipeline_mode<synchronous>, transform_indices = @transform_3, window_bounds = array<i64: 32, 32>}, {pipeline_mode = #tpu.pipeline_mode<synchronous>, transform_indices = @transform_4, window_bounds = array<i64: 32, 1>}, {pipeline_mode = #tpu.pipeline_mode<synchronous>, transform_indices = @transform_5, window_bounds = array<i64: 3, 32>}, {pipeline_mode = #tpu.pipeline_mode<synchronous>, transform_indices = @transform_6, window_bounds = array<i64: 3, 1>}, {transform_indices = @transform_7, window_bounds = array<i64: 3, 128>}]} {
    %c0 = arith.constant 0 : index
    %c0_0 = arith.constant 0 : index
    %0 = vector.load %arg1[%c0, %c0_0] : memref<9x128xf32, #tpu.memory_space<vmem>>, vector<9x128xf32>
    %c0_1 = arith.constant 0 : index
    %c0_2 = arith.constant 0 : index
    %1 = vector.load %arg2[%c0_1, %c0_2] : memref<32x9xf32, #tpu.memory_space<vmem>>, vector<32x9xf32>
    %cst = arith.constant dense<0.000000e+00> : vector<32x128xf32>
    %2 = tpu.matmul %1, %0, %cst {dimension_numbers = #tpu.dot_dimension_numbers<[1], [0], [0], [1], [0, 0, 1, 1], [], []>} : vector<32x9xf32>, vector<9x128xf32>, vector<32x128xf32> -> vector<32x128xf32>
    %c0_3 = arith.constant 0 : index
    %c0_4 = arith.constant 0 : index
    %3 = vector.load %arg3[%c0_3, %c0_4] : memref<32x1xf32, #tpu.memory_space<vmem>>, vector<32x1xf32>
    %4 = vector.broadcast %3 : vector<32x1xf32> to vector<32x128xf32>
    %5 = arith.addf %2, %4 : vector<32x128xf32>
    %cst_5 = arith.constant 0.000000e+00 : f32
    %6 = vector.broadcast %cst_5 : f32 to vector<32x128xf32>
    %7 = arith.maximumf %5, %6 : vector<32x128xf32>
    %c0_6 = arith.constant 0 : index
    %c0_7 = arith.constant 0 : index
    %8 = vector.load %arg4[%c0_6, %c0_7] : memref<32x32xf32, #tpu.memory_space<vmem>>, vector<32x32xf32>
    %cst_8 = arith.constant dense<0.000000e+00> : vector<32x128xf32>
    %9 = tpu.matmul %8, %7, %cst_8 {dimension_numbers = #tpu.dot_dimension_numbers<[1], [0], [0], [1], [0, 0, 1, 1], [], []>} : vector<32x32xf32>, vector<32x128xf32>, vector<32x128xf32> -> vector<32x128xf32>
    %c0_9 = arith.constant 0 : index
    %c0_10 = arith.constant 0 : index
    %10 = vector.load %arg5[%c0_9, %c0_10] : memref<32x1xf32, #tpu.memory_space<vmem>>, vector<32x1xf32>
    %11 = vector.broadcast %10 : vector<32x1xf32> to vector<32x128xf32>
    %12 = arith.addf %9, %11 : vector<32x128xf32>
    %cst_11 = arith.constant 0.000000e+00 : f32
    %13 = vector.broadcast %cst_11 : f32 to vector<32x128xf32>
    %14 = arith.maximumf %12, %13 : vector<32x128xf32>
    %c0_12 = arith.constant 0 : index
    %c0_13 = arith.constant 0 : index
    %15 = vector.load %arg6[%c0_12, %c0_13] : memref<3x32xf32, #tpu.memory_space<vmem>>, vector<3x32xf32>
    %cst_14 = arith.constant dense<0.000000e+00> : vector<3x128xf32>
    %16 = tpu.matmul %15, %14, %cst_14 {dimension_numbers = #tpu.dot_dimension_numbers<[1], [0], [0], [1], [0, 0, 1, 1], [], []>} : vector<3x32xf32>, vector<32x128xf32>, vector<3x128xf32> -> vector<3x128xf32>
    %c0_15 = arith.constant 0 : index
    %c0_16 = arith.constant 0 : index
    %17 = vector.load %arg7[%c0_15, %c0_16] : memref<3x1xf32, #tpu.memory_space<vmem>>, vector<3x1xf32>
    %18 = vector.broadcast %17 : vector<3x1xf32> to vector<3x128xf32>
    %19 = arith.addf %16, %18 : vector<3x128xf32>
    %c0_17 = arith.constant 0 : index
    %c0_18 = arith.constant 0 : index
    %20 = vector.load %arg8[%c0_17, %c0_18] : memref<3x128xf32, #tpu.memory_space<vmem>>, vector<3x128xf32>
    tpu.vector_store %arg8[%c0_17, %c0_18], %19 {strides = array<i32>} : memref<3x128xf32, #tpu.memory_space<vmem>>, vector<3x128xf32>,
    return
  }
  func.func @transform_0(%arg0: i32) -> (i32, i32) {
    %c0_i32 = arith.constant 0 : i32
    %c0_i32_0 = arith.constant 0 : i32
    return %c0_i32, %arg0 : i32, i32
  }
  func.func @transform_1(%arg0: i32) -> (i32, i32) {
    %c0_i32 = arith.constant 0 : i32
    %c0_i32_0 = arith.constant 0 : i32
    %c0_i32_1 = arith.constant 0 : i32
    return %c0_i32, %c0_i32_0 : i32, i32
  }
  func.func @transform_2(%arg0: i32) -> (i32, i32) {
    %c0_i32 = arith.constant 0 : i32
    %c0_i32_0 = arith.constant 0 : i32
    %c0_i32_1 = arith.constant 0 : i32
    return %c0_i32, %c0_i32_0 : i32, i32
  }
  func.func @transform_3(%arg0: i32) -> (i32, i32) {
    %c0_i32 = arith.constant 0 : i32
    %c0_i32_0 = arith.constant 0 : i32
    %c0_i32_1 = arith.constant 0 : i32
    return %c0_i32, %c0_i32_0 : i32, i32
  }
  func.func @transform_4(%arg0: i32) -> (i32, i32) {
    %c0_i32 = arith.constant 0 : i32
    %c0_i32_0 = arith.constant 0 : i32
    %c0_i32_1 = arith.constant 0 : i32
    return %c0_i32, %c0_i32_0 : i32, i32
  }
  func.func @transform_5(%arg0: i32) -> (i32, i32) {
    %c0_i32 = arith.constant 0 : i32
    %c0_i32_0 = arith.constant 0 : i32
    %c0_i32_1 = arith.constant 0 : i32
    return %c0_i32, %c0_i32_0 : i32, i32
  }
  func.func @transform_6(%arg0: i32) -> (i32, i32) {
    %c0_i32 = arith.constant 0 : i32
    %c0_i32_0 = arith.constant 0 : i32
    %c0_i32_1 = arith.constant 0 : i32
    return %c0_i32, %c0_i32_0 : i32, i32
  }
  func.func @transform_7(%arg0: i32) -> (i32, i32) {
    %c0_i32 = arith.constant 0 : i32
    %c0_i32_0 = arith.constant 0 : i32
    return %c0_i32, %arg0 : i32, i32
  }
}

</mosaic_0001>

<llo_original>
// kernel: tpu_custom_call.1
$region0: #{tpu_custom_call.1}
  #allocation0 [shape = 'u32[]', space=smem, size = 0x4, offset = 0x4, fixed_abs, tag = 'smem constant byte address 0x4 - core index']
  #allocation1 [shape = 'u32[72,128]{1,0:T(1,128)}', space=vmem, size = 0x9000, scoped, tag = 'internal scratch']
  %s0 = inlined_call_operand.vmem [shape: f32[9,128], index: 0, kind: input, shape index: {}]
  %s1 = inlined_call_operand.vmem [shape: f32[32,9], index: 1, kind: input, shape index: {}]
  %s2 = inlined_call_operand.vmem [shape: f32[32,1], index: 2, kind: input, shape index: {}]
  %s3 = inlined_call_operand.vmem [shape: f32[32,32], index: 3, kind: input, shape index: {}]
  %s4 = inlined_call_operand.vmem [shape: f32[32,1], index: 4, kind: input, shape index: {}]
  %s5 = inlined_call_operand.vmem [shape: f32[3,32], index: 5, kind: input, shape index: {}]
  %s6 = inlined_call_operand.vmem [shape: f32[3,1], index: 6, kind: input, shape index: {}]
  %s7 = inlined_call_operand.hbm [shape: f32[3,128], index: 7, kind: output, shape index: {}]
  %s8 = sld [smem:[#allocation0]]
  $region38: #{tpu_custom_call.1} parent=0
    _
  %s10 = ssub.s32 1, %s8
  %s11 = scalar_select 0, %s10, %s8
  $region1: #{tpu_custom_call.1} parent=0
    #allocation2 [shape = 'u8[2048]{0}', space=vmem, size = 0x800, scoped, tag = 'output window, operand 0, single buffered']
    #allocation3 [shape = 's32[1]{0}', space=sflag, size = 0x4, scoped, tag = 'scoped memory for tpu_custom_call.1']
    %12 = vsyncpa [#allocation3], 0
    // Predicated region
    $region2: #{tpu_custom_call.1} parent=1 // pred_check
      _
    $region3: #{tpu_custom_call.1} parent=1 // pred_check_branch
      %14 = sbr.rel (0) target = $region5
    $region4: #{tpu_custom_call.1} parent=1 // pred_region
      _
    $region5: #{tpu_custom_call.1} parent=1 // pred_fallthru
      _
    // Predicated region
    $region6: #{tpu_custom_call.1} parent=1 // pred_check
      _
    $region7: #{tpu_custom_call.1} parent=1 // pred_check_branch
      %16 = sbr.rel (0) target = $region9
    $region8: #{tpu_custom_call.1} parent=1 // pred_region
      _
    $region9: #{tpu_custom_call.1} parent=1 // pred_fallthru
      _
    // Predicated region
    $region10: #{tpu_custom_call.1} parent=1 // pred_check
      _
    $region11: #{tpu_custom_call.1} parent=1 // pred_check_branch
      %18 = sbr.rel (0) target = $region13
    $region12: #{tpu_custom_call.1} parent=1 // pred_region
      _
    $region13: #{tpu_custom_call.1} parent=1 // pred_fallthru
      _
    // Predicated region
    $region14: #{tpu_custom_call.1} parent=1 // pred_check
      _
    $region15: #{tpu_custom_call.1} parent=1 // pred_check_branch
      %20 = sbr.rel (0) target = $region17
    $region16: #{tpu_custom_call.1} parent=1 // pred_region
      _
    $region17: #{tpu_custom_call.1} parent=1 // pred_fallthru
      _
    // Predicated region
    $region18: #{tpu_custom_call.1} parent=1 // pred_check
      _
    $region19: #{tpu_custom_call.1} parent=1 // pred_check_branch
      %22 = sbr.rel (0) target = $region21
    $region20: #{tpu_custom_call.1} parent=1 // pred_region
      _
    $region21: #{tpu_custom_call.1} parent=1 // pred_fallthru
      _
    // Predicated region
    $region22: #{tpu_custom_call.1} parent=1 // pred_check
      _
    $region23: #{tpu_custom_call.1} parent=1 // pred_check_branch
      %24 = sbr.rel (0) target = $region25
    $region24: #{tpu_custom_call.1} parent=1 // pred_region
      _
    $region25: #{tpu_custom_call.1} parent=1 // pred_fallthru
      _
    // Predicated region
    $region26: #{tpu_custom_call.1} parent=1 // pred_check
      _
    $region27: #{tpu_custom_call.1} parent=1 // pred_check_branch
      %26 = sbr.rel (0) target = $region29
    $region28: #{tpu_custom_call.1} parent=1 // pred_region
      _
    $region29: #{tpu_custom_call.1} parent=1 // pred_fallthru
      _
    %v27 = vld [vmem:[%s0] sm:$0xff]
    %v28 = vld [vmem:[%s0 + $0x8] sm:$0x1]
    %v29 = vld [vmem:[%s1] sm:$0xff]
    %v30 = vld [vmem:[%s1 + $0x8] sm:$0xff]
    %v31 = vld [vmem:[%s1 + $0x10] sm:$0xff]
    %v32 = vld [vmem:[%s1 + $0x18] sm:$0xff]
    %v33 = vld [vmem:[%s2] sm:$0xff]
    %v34 = vld [vmem:[%s2 + $0x8] sm:$0xff]
    %v35 = vld [vmem:[%s2 + $0x10] sm:$0xff]
    %v36 = vld [vmem:[%s2 + $0x18] sm:$0xff]
    %38 = vset.pattern.permute.xlu0 0
    %39 = vperm.xlu0 %38, %v33
    %v40 = vpop.permute.xlu0 %39
    %43 = vset.pattern.permute.xlu0 0
    %44 = vperm.xlu0 %43, %v34
    %v45 = vpop.permute.xlu0 %44
    %48 = vset.pattern.permute.xlu0 0
    %49 = vperm.xlu0 %48, %v35
    %v50 = vpop.permute.xlu0 %49
    %53 = vset.pattern.permute.xlu0 0
    %54 = vperm.xlu0 %53, %v36
    %v55 = vpop.permute.xlu0 %54
    %vm57 = vcmask 72704
    %v59 = vsel %vm57, %v29, 0
    %v62 = vsel %vm57, %v30, 0
    %v65 = vsel %vm57, %v31, 0
    %v68 = vsel %vm57, %v32, 0
    %vm70 = vcmask 1040384
    %v72 = vsel %vm70, %v28, 0
    %74 = vmatpush.msra.mxu0 0.0
    %75 = vmatpush.msra.mxu0 0.0
    %76 = vmatpush.msra.mxu0 0.0
    %77 = vmatpush.msra.mxu0 0.0
    %78 = vmatpush.msra.mxu0 0.0
    %79 = vmatpush.msra.mxu0 0.0
    %80 = vmatpush.msra.mxu0 0.0
    %81 = vmatpush.msra.mxu0 0.0
    %82 = vmatpush.msra.mxu0 0.0
    %83 = vmatpush.msra.mxu0 0.0
    %84 = vmatpush.msra.mxu0 0.0
    %85 = vmatpush.msra.mxu0 0.0
    %86 = vmatpush.msra.mxu0 0.0
    %87 = vmatpush.msra.mxu0 0.0
    %88 = vmatpush.msra.mxu0 %v72
    %89 = vmatpush.msra.mxu0 %v27
    %90 = vmatmul.f32.gmra.mxu0 %v59
    %v91 = vpop.f32.mrf.mxu0
    %v92 = vadd.f32 %v40, %v91
    %93 = vmatmul.f32.gmra.mxu0 %v62
    %v94 = vpop.f32.mrf.mxu0
    %v95 = vadd.f32 %v45, %v94
    %96 = vmatmul.f32.gmra.mxu0 %v65
    %v97 = vpop.f32.mrf.mxu0
    %v98 = vadd.f32 %v50, %v97
    %99 = vmatmul.f32.gmra.mxu0 %v68
    %v100 = vpop.f32.mrf.mxu0
    %v101 = vadd.f32 %v55, %v100
    %102 = vdwg.mxu0
    %v103 = vmax.f32 %v92, 0.0
    %v104 = vmax.f32 %v95, 0.0
    %v105 = vmax.f32 %v98, 0.0
    %v106 = vmax.f32 %v101, 0.0
    %v107 = vld [vmem:[%s3] sm:$0xff]
    %v108 = vld [vmem:[%s3 + $0x8] sm:$0xff]
    %v109 = vld [vmem:[%s3 + $0x10] sm:$0xff]
    %v110 = vld [vmem:[%s3 + $0x18] sm:$0xff]
    %v111 = vld [vmem:[%s4] sm:$0xff]
    %v112 = vld [vmem:[%s4 + $0x8] sm:$0xff]
    %v113 = vld [vmem:[%s4 + $0x10] sm:$0xff]
    %v114 = vld [vmem:[%s4 + $0x18] sm:$0xff]
    %116 = vset.pattern.permute.xlu0 0
    %117 = vperm.xlu0 %116, %v111
    %v118 = vpop.permute.xlu0 %117
    %121 = vset.pattern.permute.xlu0 0
    %122 = vperm.xlu0 %121, %v112
    %v123 = vpop.permute.xlu0 %122
    %126 = vset.pattern.permute.xlu0 0
    %127 = vperm.xlu0 %126, %v113
    %v128 = vpop.permute.xlu0 %127
    %131 = vset.pattern.permute.xlu0 0
    %132 = vperm.xlu0 %131, %v114
    %v133 = vpop.permute.xlu0 %132
    %vm135 = vcmask 261120
    %v137 = vsel %vm135, %v107, 0
    %v140 = vsel %vm135, %v108, 0
    %v143 = vsel %vm135, %v109, 0
    %v146 = vsel %vm135, %v110, 0
    %148 = vmatpush.msra.mxu0 0.0
    %149 = vmatpush.msra.mxu0 0.0
    %150 = vmatpush.msra.mxu0 0.0
    %151 = vmatpush.msra.mxu0 0.0
    %152 = vmatpush.msra.mxu0 0.0
    %153 = vmatpush.msra.mxu0 0.0
    %154 = vmatpush.msra.mxu0 0.0
    %155 = vmatpush.msra.mxu0 0.0
    %156 = vmatpush.msra.mxu0 0.0
    %157 = vmatpush.msra.mxu0 0.0
    %158 = vmatpush.msra.mxu0 0.0
    %159 = vmatpush.msra.mxu0 0.0
    %160 = vmatpush.msra.mxu0 %v106
    %161 = vmatpush.msra.mxu0 %v105
    %162 = vmatpush.msra.mxu0 %v104
    %163 = vmatpush.msra.mxu0 %v103
    %164 = vmatmul.f32.gmra.mxu0 %v137
    %v165 = vpop.f32.mrf.mxu0
    %v166 = vadd.f32 %v118, %v165
    %167 = vmatmul.f32.gmra.mxu0 %v140
    %v168 = vpop.f32.mrf.mxu0
    %v169 = vadd.f32 %v123, %v168
    %170 = vmatmul.f32.gmra.mxu0 %v143
    %v171 = vpop.f32.mrf.mxu0
    %v172 = vadd.f32 %v128, %v171
    %173 = vmatmul.f32.gmra.mxu0 %v146
    %v174 = vpop.f32.mrf.mxu0
    %v175 = vadd.f32 %v133, %v174
    %176 = vdwg.mxu0
    %v177 = vmax.f32 %v166, 0.0
    %v178 = vmax.f32 %v169, 0.0
    %v179 = vmax.f32 %v172, 0.0
    %v180 = vmax.f32 %v175, 0.0
    %v181 = vld [vmem:[%s5] sm:$0x7]
    %v182 = vld [vmem:[%s6] sm:$0x7]
    %184 = vset.pattern.permute.xlu0 0
    %185 = vperm.xlu0 %184, %v182
    %v186 = vpop.permute.xlu0 %185
    %v189 = vsel %vm135, %v181, 0
    %191 = vmatpush.msra.mxu0 0.0
    %192 = vmatpush.msra.mxu0 0.0
    %193 = vmatpush.msra.mxu0 0.0
    %194 = vmatpush.msra.mxu0 0.0
    %195 = vmatpush.msra.mxu0 0.0
    %196 = vmatpush.msra.mxu0 0.0
    %197 = vmatpush.msra.mxu0 0.0
    %198 = vmatpush.msra.mxu0 0.0
    %199 = vmatpush.msra.mxu0 0.0
    %200 = vmatpush.msra.mxu0 0.0
    %201 = vmatpush.msra.mxu0 0.0
    %202 = vmatpush.msra.mxu0 0.0
    %203 = vmatpush.msra.mxu0 %v180
    %204 = vmatpush.msra.mxu0 %v179
    %205 = vmatpush.msra.mxu0 %v178
    %206 = vmatpush.msra.mxu0 %v177
    %207 = vmatmul.f32.gmra.mxu0 %v189
    %v208 = vpop.f32.mrf.mxu0
    %v209 = vadd.f32 %v186, %v208
    %210 = vdwg.mxu0
    %211 = vst [vmem:[#allocation2] sm:$0x7] %v209
    // Predicated region
    $region30: #{tpu_custom_call.1} parent=1 // pred_check
      _
    $region31: #{tpu_custom_call.1} parent=1 // pred_check_branch
      %213 = sbr.rel (0) target = $region33
    $region32: #{tpu_custom_call.1} parent=1 // pred_region
      %215 = vsyncadd [#allocation3], 0
      %s217 = sshll.u32 [#allocation2], 4
      %s218 = int_to_ptr.vmem [resolvable:$true] %s217
      %s219 = sshll.u32 %s7, 4
      %s220 = int_to_ptr.hbm [resolvable:$true] %s219
      %222 = dma.vmem_to_hbm [thread:$0]  %s218, 64, %s220, [#allocation3]
    $region33: #{tpu_custom_call.1} parent=1 // pred_fallthru
      _
    // Predicated region
    $region34: #{tpu_custom_call.1} parent=1 // pred_check
      _
    $region35: #{tpu_custom_call.1} parent=1 // pred_check_branch
      %224 = sbr.rel (0) target = $region37
    $region36: #{tpu_custom_call.1} parent=1 // pred_region
      %226 = dma.done [#allocation3], 64
    $region37: #{tpu_custom_call.1} parent=1 // pred_fallthru
      _
    %227 = vsyncpa [#allocation3], 1

</llo_original>
